<compile_context>
chip_gen: v7x
topology: tpu7x:2x2x1
jax: 0.10.0
libtpu: 0.0.40
codegen_flags: <defaults>
</compile_context>

<pallas_src>
import functools
import math

import jax
import jax.numpy as jnp
from jax import lax
from jax.experimental import pallas as pl
from jax.experimental.pallas import tpu as pltpu


# ============================= Pallas kernels ==============================

def _backbone_bottleneck_kernel(x_ref, w1_ref, b1_ref, w2_ref, b2_ref, o_ref):
    """Fused patch-embed conv (as matmul) + ReLU + 1x1 bottleneck conv."""
    x = x_ref[...].astype(jnp.bfloat16)
    y = jnp.dot(x, w1_ref[...].astype(jnp.bfloat16),
                preferred_element_type=jnp.float32) + b1_ref[...]
    y = jnp.maximum(y, 0.0)
    o_ref[...] = (jnp.dot(y.astype(jnp.bfloat16), w2_ref[...].astype(jnp.bfloat16),
                          preferred_element_type=jnp.float32) + b2_ref[...])


def pallas_backbone_bottleneck(x, w1, b1, w2, b2):
    """y = relu(x @ w1 + b1) @ w2 + b2 in ONE kernel, M-tiled, parallel grid."""
    M, K = x.shape
    N1 = w1.shape[1]
    N2 = w2.shape[1]
    tm = M
    for cand in (1024, 512, 256):   # tile M only when it is big enough to matter
        if M > cand and M % cand == 0:
            tm = cand
            break
    return pl.pallas_call(
        _backbone_bottleneck_kernel,
        out_shape=jax.ShapeDtypeStruct((M, N2), jnp.float32),
        grid=(M // tm,),
        in_specs=[pl.BlockSpec((tm, K), lambda i: (i, 0)),
                  pl.BlockSpec((K, N1), lambda i: (0, 0)),
                  pl.BlockSpec((1, N1), lambda i: (0, 0)),
                  pl.BlockSpec((N1, N2), lambda i: (0, 0)),
                  pl.BlockSpec((1, N2), lambda i: (0, 0))],
        out_specs=pl.BlockSpec((tm, N2), lambda i: (i, 0)),
        compiler_params=pltpu.CompilerParams(dimension_semantics=("parallel",)),
    )(x, w1, b1.reshape(1, N1), w2, b2.reshape(1, N2))


def _encoder_layer_kernel(qb_ref, kb_ref, vb_ref, bias_ref,
                          wq_ref, bq_ref, wk_ref, bk_ref, wv_ref, bv_ref,
                          wo_ref, bo_ref, g1_ref, be1_ref,
                          w1_ref, b1_ref, w2_ref, b2_ref, g2_ref, be2_ref,
                          o_ref, *, nhead, scale):
    """One fused lite-encoder layer for a single batch element (grid over B).

    Per-head weights are passed as (H, C, dh) / (H, dh, C) so no in-kernel lane
    slicing or 3-D reshapes are needed; the output projection is accumulated as
    sum_h o_h @ wo[h] which is equivalent to concat(o_h) @ wo.
    """
    f32 = jnp.float32
    bf16 = jnp.bfloat16
    xq = qb_ref[...]                      # (Lq, C)  f32
    xk = kb_ref[...]                      # (Lkp, C) f32 (zero-padded keys)
    xv = vb_ref[...]                      # (Lkp, C)
    bias = bias_ref[...]                  # (1, Lkp) additive mask (0 / -1e9)
    Lq, C = xq.shape
    xq_b = xq.astype(bf16)
    xk_b = xk.astype(bf16)
    xv_b = xv.astype(bf16)

    attn = jnp.zeros((Lq, C), f32)
    for h in range(nhead):                # static unroll, nhead is small
        q_h = jnp.dot(xq_b, wq_ref[h].astype(bf16),
                      preferred_element_type=f32) + bq_ref[h]
        k_h = jnp.dot(xk_b, wk_ref[h].astype(bf16),
                      preferred_element_type=f32) + bk_ref[h]
        v_h = jnp.dot(xv_b, wv_ref[h].astype(bf16),
                      preferred_element_type=f32) + bv_ref[h]
        # scores (Lq, Lkp); pad/key-mask bias applied BEFORE the row-max.
        s = lax.dot_general(q_h.astype(bf16), k_h.astype(bf16),
                            (((1,), (1,)), ((), ())),
                            preferred_element_type=f32)
        s = s * scale + bias
        s = s - jnp.max(s, axis=-1, keepdims=True)
        p = jnp.exp(s)
        # NOTE: if every key of a row is masked the distribution degenerates to
        # uniform (matches previous behaviour; acceptable for this tracker).
        p = p * pl.reciprocal(jnp.sum(p, axis=-1, keepdims=True), approx=True)
        o_h = jnp.dot(p.astype(bf16), v_h.astype(bf16),
                      preferred_element_type=f32)                    # (Lq, dh)
        attn = attn + jnp.dot(o_h.astype(bf16), wo_ref[h].astype(bf16),
                              preferred_element_type=f32)            # (Lq, C)
    attn = attn + bo_ref[...]

    src = xq + attn
    # LayerNorm 1 (f32 epilogue)
    mu = jnp.mean(src, axis=-1, keepdims=True)
    xc = src - mu
    var = jnp.mean(xc * xc, axis=-1, keepdims=True)
    src = xc * lax.rsqrt(var + 1e-5) * g1_ref[...] + be1_ref[...]
    # FFN
    hid = jnp.dot(src.astype(bf16), w1_ref[...].astype(bf16),
                  preferred_element_type=f32) + b1_ref[...]
    hid = jnp.maximum(hid, 0.0)
    ffn = jnp.dot(hid.astype(bf16), w2_ref[...].astype(bf16),
                  preferred_element_type=f32) + b2_ref[...]
    src2 = src + ffn
    # LayerNorm 2
    mu2 = jnp.mean(src2, axis=-1, keepdims=True)
    xc2 = src2 - mu2
    var2 = jnp.mean(xc2 * xc2, axis=-1, keepdims=True)
    o_ref[...] = xc2 * lax.rsqrt(var2 + 1e-5) * g2_ref[...] + be2_ref[...]


def pallas_encoder_layer(qb, kb, vb, bias, params, nhead):
    """qb:(B,Lq,C)  kb/vb:(B,Lkp,C)  bias:(B,1,Lkp)  ->  (B,Lq,C)."""
    B, Lq, C = qb.shape
    Lkp = kb.shape[1]
    dh = C // nhead
    Fd = params['w1'].shape[1]
    kern = functools.partial(_encoder_layer_kernel, nhead=nhead,
                             scale=1.0 / math.sqrt(dh))

    def full(shape):
        n = len(shape)
        return pl.BlockSpec(shape, lambda b, _n=n: (0,) * _n)

    return pl.pallas_call(
        kern,
        out_shape=jax.ShapeDtypeStruct((B, Lq, C), jnp.float32),
        grid=(B,),
        in_specs=[
            pl.BlockSpec((None, Lq, C), lambda b: (b, 0, 0)),
            pl.BlockSpec((None, Lkp, C), lambda b: (b, 0, 0)),
            pl.BlockSpec((None, Lkp, C), lambda b: (b, 0, 0)),
            pl.BlockSpec((None, 1, Lkp), lambda b: (b, 0, 0)),
            full((nhead, C, dh)),   # wq per head
            full((nhead, 1, dh)),   # bq per head
            full((nhead, C, dh)),   # wk
            full((nhead, 1, dh)),   # bk
            full((nhead, C, dh)),   # wv
            full((nhead, 1, dh)),   # bv
            full((nhead, dh, C)),   # wo per head
            full((1, C)),           # bo
            full((1, C)),           # ln1 gamma
            full((1, C)),           # ln1 beta
            full((C, Fd)),          # w1
            full((1, Fd)),          # b1
            full((Fd, C)),          # w2
            full((1, C)),           # b2
            full((1, C)),           # ln2 gamma
            full((1, C)),           # ln2 beta
        ],
        out_specs=pl.BlockSpec((None, Lq, C), lambda b: (b, 0, 0)),
        compiler_params=pltpu.CompilerParams(dimension_semantics=("parallel",)),
    )(qb, kb, vb, bias,
      params['wq'], params['bq'], params['wk'], params['bk'],
      params['wv'], params['bv'], params['wo'], params['bo'],
      params['g1'], params['be1'], params['w1'], params['b1'],
      params['w2'], params['b2'], params['g2'], params['be2'])


def _box_head_kernel(pm_ref, w1t_ref, b1c_ref, w2t_ref, b2c_ref,
                     cx_ref, cy_ref, ex_ref, ey_ref):
    """Fused CORNER_LITE head for one batch element: conv3x3(im2col matmul)
    + ReLU + conv1x1 matmul + lane-dense soft-argmax over the HW axis."""
    f32 = jnp.float32
    pm = pm_ref[...]                                       # (9C, HW)
    h1 = jnp.dot(w1t_ref[...].astype(jnp.bfloat16), pm.astype(jnp.bfloat16),
                 preferred_element_type=f32) + b1c_ref[...]        # (Cmid, HW)
    h1 = jnp.maximum(h1, 0.0)
    s = jnp.dot(w2t_ref[...], h1, preferred_element_type=f32) + b2c_ref[...]  # (2, HW)
    s = s - jnp.max(s, axis=-1, keepdims=True)
    p = jnp.exp(s)
    p = p * pl.reciprocal(jnp.sum(p, axis=-1, keepdims=True), approx=True)
    ex_ref[...] = jnp.sum(p * cx_ref[...], axis=-1, keepdims=True)  # (2, 1)
    ey_ref[...] = jnp.sum(p * cy_ref[...], axis=-1, keepdims=True)  # (2, 1)


def pallas_box_head(pm_t, w1t, b1c, w2t, b2c, cx, cy):
    """pm_t:(B,9C,HW) -> (expected_x, expected_y) each (B,2,1) [rows: tl, br]."""
    B, K9C, HW = pm_t.shape
    Cmid = w1t.shape[0]
    return pl.pallas_call(
        _box_head_kernel,
        out_shape=(jax.ShapeDtypeStruct((B, 2, 1), jnp.float32),
                   jax.ShapeDtypeStruct((B, 2, 1), jnp.float32)),
        grid=(B,),
        in_specs=[pl.BlockSpec((None, K9C, HW), lambda b: (b, 0, 0)),
                  pl.BlockSpec((Cmid, K9C), lambda b: (0, 0)),
                  pl.BlockSpec((Cmid, 1), lambda b: (0, 0)),
                  pl.BlockSpec((2, Cmid), lambda b: (0, 0)),
                  pl.BlockSpec((2, 1), lambda b: (0, 0)),
                  pl.BlockSpec((1, HW), lambda b: (0, 0)),
                  pl.BlockSpec((1, HW), lambda b: (0, 0))],
        out_specs=(pl.BlockSpec((None, 2, 1), lambda b: (b, 0, 0)),
                   pl.BlockSpec((None, 2, 1), lambda b: (b, 0, 0))),
        compiler_params=pltpu.CompilerParams(dimension_semantics=("parallel",)),
    )(pm_t, w1t, b1c, w2t, b2c, cx, cy)


# ============================== JAX glue ===================================

def nearest_downsample(mask_f, out_h, out_w):
    """Matches F.interpolate(mode='nearest') for integer downsample factors."""
    B, H, W = mask_f.shape
    iy = (jnp.arange(out_h) * H // out_h).astype(jnp.int32)
    ix = (jnp.arange(out_w) * W // out_w).astype(jnp.int32)
    return mask_f[:, iy, :][:, :, ix]


def box_xyxy_to_cxcywh(x):
    x0, y0, x1, y1 = x[..., 0], x[..., 1], x[..., 2], x[..., 3]
    return jnp.stack([(x0 + x1) / 2.0, (y0 + y1) / 2.0, x1 - x0, y1 - y0], axis=-1)


# ============================== Model ======================================

class STARKLightningXtrtPallas:
    """JAX/Pallas re-implementation of STARKLightningXtrt.forward."""

    def __init__(self, key, hidden_dim=32, backbone_channels=64, nhead=4,
                 dim_ffn=64, patch=4, feat_sz_z=4, feat_sz_s=8,
                 head_type='CORNER_LITE'):
        assert 'CORNER' in head_type
        self.hidden = hidden_dim
        self.num_channels = backbone_channels
        self.nhead = nhead
        self.patch = patch
        self.feat_sz_z = feat_sz_z
        self.feat_sz_s = feat_sz_s
        self.feat_len_s = feat_sz_s * feat_sz_s
        self.head_type = head_type
        self.distill = False

        C = hidden_dim
        H = nhead
        dh = C // H
        ks = jax.random.split(key, 12)
        n = lambda k, shape, scale=0.02: (scale * jax.random.normal(k, shape)).astype(jnp.float32)
        z = lambda shape: jnp.zeros(shape, jnp.float32)
        o = lambda shape: jnp.ones(shape, jnp.float32)

        # minimal backbone: (patch x patch, stride=patch) patch-embed conv, 3 -> num_channels
        self.backbone_w = n(ks[0], (patch * patch * 3, backbone_channels))
        self.backbone_b = z((backbone_channels,))

        # learned positional embeddings, stored pre-flattened as (HW, C)
        self.pos_emb_z0 = n(ks[1], (feat_sz_z * feat_sz_z, C), 1.0)
        self.pos_emb_x = n(ks[2], (feat_sz_s * feat_sz_s, C), 1.0)

        # bottleneck: Conv2d(backbone.num_channels, hidden_dim, kernel_size=1)
        self.bottleneck_w = n(ks[3], (backbone_channels, C))
        self.bottleneck_b = z((C,))

        # lightweight transformer encoder layer (d_model = hidden_dim),
        # weights stored in per-head layout for the fused kernel.
        wq = n(ks[4], (C, C)); wk = n(ks[5], (C, C)); wv = n(ks[6], (C, C))
        wo = n(ks[7], (C, C))
        self.enc_params = {
            'wq': wq.reshape(C, H, dh).transpose(1, 0, 2),   # (H, C, dh)
            'bq': z((H, 1, dh)),
            'wk': wk.reshape(C, H, dh).transpose(1, 0, 2),
            'bk': z((H, 1, dh)),
            'wv': wv.reshape(C, H, dh).transpose(1, 0, 2),
            'bv': z((H, 1, dh)),
            'wo': wo.reshape(H, dh, C),                      # (H, dh, C)
            'bo': z((1, C)),
            'g1': o((1, C)), 'be1': z((1, C)),
            'w1': n(ks[8], (C, dim_ffn)), 'b1': z((1, dim_ffn)),
            'w2': n(ks[9], (dim_ffn, C)), 'b2': z((1, C)),
            'g2': o((1, C)), 'be2': z((1, C)),
        }

        # CORNER_LITE box head: 3x3 conv (C -> C/2, ReLU) + 1x1 conv (-> 2 maps)
        # + soft-argmax.  Weights stored pre-transposed for the fused kernel.
        ch = C // 2
        bh_w1 = n(ks[10], (3, 3, C, ch))
        bh_w2 = n(ks[11], (ch, 2))
        self.bh_w1t = jnp.transpose(bh_w1.reshape(9 * C, ch), (1, 0))  # (ch, 9C)
        self.bh_b1c = z((ch, 1))
        self.bh_w2t = jnp.transpose(bh_w2, (1, 0))                     # (2, ch)
        self.bh_b2c = z((2, 1))
        idx = jnp.arange(feat_sz_s, dtype=jnp.float32) / float(feat_sz_s)
        self.coord_x = jnp.tile(idx, feat_sz_s).reshape(1, self.feat_len_s)    # x fastest
        self.coord_y = jnp.repeat(idx, feat_sz_s).reshape(1, self.feat_len_s)

    # ----------------------------- API --------------------------------
    def forward(self, img=None, mask=None, q=None, k=None, v=None,
                key_padding_mask=None, mode='backbone', zx='template', softmax=True):
        if mode == 'backbone':
            return self.forward_backbone(img, zx, mask)
        elif mode == 'transformer':
            return self.forward_transformer(q, k, v, key_padding_mask=key_padding_mask,
                                            softmax=softmax)
        else:
            raise ValueError

    # --------------------------- backbone ------------------------------
    def forward_backbone(self, img, zx, mask):
        # img: NCHW (B, 3, H, W); mask: (B, H, W) bool (True = padded)
        x = jnp.transpose(img, (0, 2, 3, 1))                         # NHWC
        B, H, W, Cin = x.shape
        p = self.patch
        h, w = H // p, W // p
        xr = x.reshape(B, h, p, w, p, Cin).transpose(0, 1, 3, 2, 4, 5)
        xr = xr.reshape(B * h * w, p * p * Cin)
        # fused patch-embed + ReLU + 1x1 bottleneck (single Pallas kernel)
        y = pallas_backbone_bottleneck(xr, self.backbone_w, self.backbone_b,
                                       self.bottleneck_w, self.bottleneck_b)
        if zx == 'search':
            pos = self.pos_emb_x
        elif 'template' in zx:
            pos = getattr(self, 'pos_emb_z%d' % int(zx[-1]))
        else:
            raise ValueError("zx should be 'template_0' or 'search'.")
        mask_down = nearest_downsample(mask.astype(jnp.float32), h, w).astype(bool)
        feat_vec = y.reshape(B, h * w, self.hidden).transpose(1, 0, 2)   # (HW, B, C)
        pos_vec = jnp.broadcast_to(pos[:, None, :], (h * w, B, self.hidden))
        mask_vec = mask_down.reshape(B, h * w)
        return {'feat': feat_vec, 'mask': mask_vec, 'pos': pos_vec}

    # -------------------------- transformer ----------------------------
    def forward_transformer(self, q, k, v, key_padding_mask=None, softmax=True):
        enc_mem = self._transformer(q, k, v, key_padding_mask)
        out, outputs_coord = self.forward_box_head(enc_mem)
        return (out, outputs_coord, None)

    def _transformer(self, q, k, v, key_padding_mask):
        Lq, B, C = q.shape
        Lk = k.shape[0]
        Lkp = ((Lk + 127) // 128) * 128            # pad keys to lane-dense width
        qb = jnp.transpose(q, (1, 0, 2))            # (B, Lq, C)
        kb = jnp.pad(jnp.transpose(k, (1, 0, 2)), ((0, 0), (0, Lkp - Lk), (0, 0)))
        vb = jnp.pad(jnp.transpose(v, (1, 0, 2)), ((0, 0), (0, Lkp - Lk), (0, 0)))
        if key_padding_mask is None:
            valid_bias = jnp.zeros((B, Lk), jnp.float32)
        else:
            valid_bias = jnp.where(key_padding_mask, -1e9, 0.0).astype(jnp.float32)
        bias = jnp.pad(valid_bias, ((0, 0), (0, Lkp - Lk)), constant_values=-1e9)
        bias = bias[:, None, :]                     # (B, 1, Lkp)
        out = pallas_encoder_layer(qb, kb, vb, bias, self.enc_params, self.nhead)
        return jnp.transpose(out, (1, 0, 2))        # (Lq, B, C)

    # --------------------------- box head ------------------------------
    def forward_box_head(self, memory, softmax=True):
        """memory: encoder embeddings (HW1+HW2, B, C) / (HW2, B, C)."""
        assert 'CORNER' in self.head_type
        L, B, C = memory.shape
        s = self.feat_sz_s
        fx = jnp.transpose(memory[-self.feat_len_s:], (1, 0, 2))       # (B, HW, C)
        x = fx.reshape(B, s, s, C)                                     # NHWC
        # TODO(synk): im2col built in XLA glue; in-kernel pltpu.roll im2col left as follow-up.
        xp = jnp.pad(x, ((0, 0), (1, 1), (1, 1), (0, 0)))
        patches = jnp.concatenate([xp[:, i:i + s, j:j + s, :]
                                   for i in range(3) for j in range(3)], axis=-1)
        pm_t = patches.reshape(B, self.feat_len_s, 9 * C).transpose(0, 2, 1)  # (B, 9C, HW)
        ex, ey = pallas_box_head(pm_t, self.bh_w1t, self.bh_b1c,
                                 self.bh_w2t, self.bh_b2c,
                                 self.coord_x, self.coord_y)
        ex = ex[..., 0]                                                # (B, 2) [tl, br]
        ey = ey[..., 0]
        coord_xyxy = jnp.stack([ex[:, 0], ey[:, 0], ex[:, 1], ey[:, 1]], axis=-1)
        outputs_coord = box_xyxy_to_cxcywh(coord_xyxy)
        out = {'pred_boxes': outputs_coord}
        return out, outputs_coord


# ================================ main =====================================

if __name__ == "__main__":
    root = jax.random.PRNGKey(0)
    kp, ki1, ki2 = jax.random.split(root, 3)
    model = STARKLightningXtrtPallas(kp)

    B = 2
    # PyTorch-style NCHW inputs
    img_z = jax.random.normal(ki1, (B, 3, 16, 16), jnp.float32)   # template
    img_x = jax.random.normal(ki2, (B, 3, 32, 32), jnp.float32)   # search
    mask_z = jnp.zeros((B, 16, 16), dtype=bool)
    mask_x = jnp.zeros((B, 32, 32), dtype=bool).at[:, :, 24:].set(True)  # padded right strip

    # backbone mode (template + search)
    out_z = model.forward(img=img_z, mask=mask_z, mode='backbone', zx='template_0')
    out_x = model.forward(img=img_x, mask=mask_x, mode='backbone', zx='search')

    # assemble transformer inputs the way the STARK-Lightning tracker does
    q = out_x['feat'] + out_x['pos']
    feat_cat = jnp.concatenate([out_z['feat'], out_x['feat']], axis=0)
    pos_cat = jnp.concatenate([out_z['pos'], out_x['pos']], axis=0)
    k = feat_cat + pos_cat
    v = feat_cat
    key_padding_mask = jnp.concatenate([out_z['mask'], out_x['mask']], axis=1)

    out, outputs_coord, _ = model.forward(q=q, k=k, v=v,
                                          key_padding_mask=key_padding_mask,
                                          mode='transformer')

    jax.block_until_ready(out['pred_boxes'])
    jax.block_until_ready(outputs_coord)
    assert out['pred_boxes'].shape == (B, 4)
    assert bool(jnp.all(jnp.isfinite(out['pred_boxes'])))
    print("KERNEL_OK")
</pallas_src>

<mosaic_0001>
module attributes {stable_mosaic.version = 11 : i64} {
  func.func @_backbone_bottleneck_kernel(%arg0: i32, %arg1: memref<32x48xf32, #tpu.memory_space<vmem>>, %arg2: memref<48x64xf32, #tpu.memory_space<vmem>>, %arg3: memref<1x64xf32, #tpu.memory_space<vmem>>, %arg4: memref<64x32xf32, #tpu.memory_space<vmem>>, %arg5: memref<1x32xf32, #tpu.memory_space<vmem>>, %arg6: memref<32x32xf32, #tpu.memory_space<vmem>>) attributes {dimension_semantics = [#tpu.dimension_semantics<parallel>], iteration_bounds = array<i64: 1>, scalar_prefetch = 0 : i64, scratch_operands = 0 : i64, tpu.core_type = #tpu.core_type<tc>, window_params = [{transform_indices = @transform_0, window_bounds = array<i64: 32, 48>}, {pipeline_mode = #tpu.pipeline_mode<synchronous>, transform_indices = @transform_1, window_bounds = array<i64: 48, 64>}, {pipeline_mode = #tpu.pipeline_mode<synchronous>, transform_indices = @transform_2, window_bounds = array<i64: 1, 64>}, {pipeline_mode = #tpu.pipeline_mode<synchronous>, transform_indices = @transform_3, window_bounds = array<i64: 64, 32>}, {pipeline_mode = #tpu.pipeline_mode<synchronous>, transform_indices = @transform_4, window_bounds = array<i64: 1, 32>}, {transform_indices = @transform_5, window_bounds = array<i64: 32, 32>}]} {
    %c0 = arith.constant 0 : index
    %c0_0 = arith.constant 0 : index
    %0 = vector.load %arg1[%c0, %c0_0] : memref<32x48xf32, #tpu.memory_space<vmem>>, vector<32x48xf32>
    %1 = arith.truncf %0 : vector<32x48xf32> to vector<32x48xbf16>
    %c0_1 = arith.constant 0 : index
    %c0_2 = arith.constant 0 : index
    %2 = vector.load %arg2[%c0_1, %c0_2] : memref<48x64xf32, #tpu.memory_space<vmem>>, vector<48x64xf32>
    %3 = arith.truncf %2 : vector<48x64xf32> to vector<48x64xbf16>
    %cst = arith.constant dense<0.000000e+00> : vector<32x64xf32>
    %4 = tpu.matmul %1, %3, %cst {dimension_numbers = #tpu.dot_dimension_numbers<[1], [0], [0], [1], [0, 0, 1, 1], [], []>} : vector<32x48xbf16>, vector<48x64xbf16>, vector<32x64xf32> -> vector<32x64xf32>
    %c0_3 = arith.constant 0 : index
    %c0_4 = arith.constant 0 : index
    %5 = vector.load %arg3[%c0_3, %c0_4] : memref<1x64xf32, #tpu.memory_space<vmem>>, vector<1x64xf32>
    %6 = vector.broadcast %5 : vector<1x64xf32> to vector<32x64xf32>
    %7 = arith.addf %4, %6 : vector<32x64xf32>
    %cst_5 = arith.constant 0.000000e+00 : f32
    %8 = vector.broadcast %cst_5 : f32 to vector<32x64xf32>
    %9 = arith.maximumf %7, %8 : vector<32x64xf32>
    %10 = arith.truncf %9 : vector<32x64xf32> to vector<32x64xbf16>
    %c0_6 = arith.constant 0 : index
    %c0_7 = arith.constant 0 : index
    %11 = vector.load %arg4[%c0_6, %c0_7] : memref<64x32xf32, #tpu.memory_space<vmem>>, vector<64x32xf32>
    %12 = arith.truncf %11 : vector<64x32xf32> to vector<64x32xbf16>
    %cst_8 = arith.constant dense<0.000000e+00> : vector<32x32xf32>
    %13 = tpu.matmul %10, %12, %cst_8 {dimension_numbers = #tpu.dot_dimension_numbers<[1], [0], [0], [1], [0, 0, 1, 1], [], []>} : vector<32x64xbf16>, vector<64x32xbf16>, vector<32x32xf32> -> vector<32x32xf32>
    %c0_9 = arith.constant 0 : index
    %c0_10 = arith.constant 0 : index
    %14 = vector.load %arg5[%c0_9, %c0_10] : memref<1x32xf32, #tpu.memory_space<vmem>>, vector<1x32xf32>
    %15 = vector.broadcast %14 : vector<1x32xf32> to vector<32x32xf32>
    %16 = arith.addf %13, %15 : vector<32x32xf32>
    %c0_11 = arith.constant 0 : index
    %c0_12 = arith.constant 0 : index
    %17 = vector.load %arg6[%c0_11, %c0_12] : memref<32x32xf32, #tpu.memory_space<vmem>>, vector<32x32xf32>
    tpu.vector_store %arg6[%c0_11, %c0_12], %16 {strides = array<i32>} : memref<32x32xf32, #tpu.memory_space<vmem>>, vector<32x32xf32>,
    return
  }
  func.func @transform_0(%arg0: i32) -> (i32, i32) {
    %c0_i32 = arith.constant 0 : i32
    %c0_i32_0 = arith.constant 0 : i32
    return %arg0, %c0_i32 : i32, i32
  }
  func.func @transform_1(%arg0: i32) -> (i32, i32) {
    %c0_i32 = arith.constant 0 : i32
    %c0_i32_0 = arith.constant 0 : i32
    %c0_i32_1 = arith.constant 0 : i32
    return %c0_i32, %c0_i32_0 : i32, i32
  }
  func.func @transform_2(%arg0: i32) -> (i32, i32) {
    %c0_i32 = arith.constant 0 : i32
    %c0_i32_0 = arith.constant 0 : i32
    %c0_i32_1 = arith.constant 0 : i32
    return %c0_i32, %c0_i32_0 : i32, i32
  }
  func.func @transform_3(%arg0: i32) -> (i32, i32) {
    %c0_i32 = arith.constant 0 : i32
    %c0_i32_0 = arith.constant 0 : i32
    %c0_i32_1 = arith.constant 0 : i32
    return %c0_i32, %c0_i32_0 : i32, i32
  }
  func.func @transform_4(%arg0: i32) -> (i32, i32) {
    %c0_i32 = arith.constant 0 : i32
    %c0_i32_0 = arith.constant 0 : i32
    %c0_i32_1 = arith.constant 0 : i32
    return %c0_i32, %c0_i32_0 : i32, i32
  }
  func.func @transform_5(%arg0: i32) -> (i32, i32) {
    %c0_i32 = arith.constant 0 : i32
    %c0_i32_0 = arith.constant 0 : i32
    return %arg0, %c0_i32 : i32, i32
  }
}

</mosaic_0001>

<llo_original>
// kernel: tpu_custom_call.1
$region0: #{tpu_custom_call.1}
  #allocation0 [shape = 'u32[]', space=smem, size = 0x4, offset = 0x4, fixed_abs, tag = 'smem constant byte address 0x4 - core index']
  #allocation1 [shape = 'u32[144,128]{1,0:T(1,128)}', space=vmem, size = 0x12000, scoped, tag = 'internal scratch']
  %s0 = inlined_call_operand.vmem [shape: f32[32,48], index: 0, kind: input, shape index: {}]
  %s1 = inlined_call_operand.vmem [shape: f32[48,64], index: 1, kind: input, shape index: {}]
  %s2 = inlined_call_operand.vmem [shape: f32[1,64], index: 2, kind: input, shape index: {}]
  %s3 = inlined_call_operand.vmem [shape: f32[64,32], index: 3, kind: input, shape index: {}]
  %s4 = inlined_call_operand.vmem [shape: f32[1,32], index: 4, kind: input, shape index: {}]
  %s5 = inlined_call_operand.hbm [shape: f32[32,32], index: 5, kind: output, shape index: {}]
  %s6 = sld [smem:[#allocation0]]
  $region30: #{tpu_custom_call.1} parent=0
    _
  %s8 = ssub.s32 1, %s6
  %s9 = scalar_select 0, %s8, %s6
  $region1: #{tpu_custom_call.1} parent=0
    #allocation2 [shape = 'u8[16384]{0}', space=vmem, size = 0x4000, scoped, tag = 'output window, operand 0, single buffered']
    #allocation3 [shape = 's32[1]{0}', space=sflag, size = 0x4, scoped, tag = 'scoped memory for tpu_custom_call.1']
    %10 = vsyncpa [#allocation3], 0
    // Predicated region
    $region2: #{tpu_custom_call.1} parent=1 // pred_check
      _
    $region3: #{tpu_custom_call.1} parent=1 // pred_check_branch
      %12 = sbr.rel (0) target = $region5
    $region4: #{tpu_custom_call.1} parent=1 // pred_region
      _
    $region5: #{tpu_custom_call.1} parent=1 // pred_fallthru
      _
    // Predicated region
    $region6: #{tpu_custom_call.1} parent=1 // pred_check
      _
    $region7: #{tpu_custom_call.1} parent=1 // pred_check_branch
      %14 = sbr.rel (0) target = $region9
    $region8: #{tpu_custom_call.1} parent=1 // pred_region
      _
    $region9: #{tpu_custom_call.1} parent=1 // pred_fallthru
      _
    // Predicated region
    $region10: #{tpu_custom_call.1} parent=1 // pred_check
      _
    $region11: #{tpu_custom_call.1} parent=1 // pred_check_branch
      %16 = sbr.rel (0) target = $region13
    $region12: #{tpu_custom_call.1} parent=1 // pred_region
      _
    $region13: #{tpu_custom_call.1} parent=1 // pred_fallthru
      _
    // Predicated region
    $region14: #{tpu_custom_call.1} parent=1 // pred_check
      _
    $region15: #{tpu_custom_call.1} parent=1 // pred_check_branch
      %18 = sbr.rel (0) target = $region17
    $region16: #{tpu_custom_call.1} parent=1 // pred_region
      _
    $region17: #{tpu_custom_call.1} parent=1 // pred_fallthru
      _
    // Predicated region
    $region18: #{tpu_custom_call.1} parent=1 // pred_check
      _
    $region19: #{tpu_custom_call.1} parent=1 // pred_check_branch
      %20 = sbr.rel (0) target = $region21
    $region20: #{tpu_custom_call.1} parent=1 // pred_region
      _
    $region21: #{tpu_custom_call.1} parent=1 // pred_fallthru
      _
    %v22 = vld [vmem:[%s0] sm:$0xff]
    %v23 = vld [vmem:[%s0 + $0x8] sm:$0xff]
    %v24 = vld [vmem:[%s0 + $0x10] sm:$0xff]
    %v25 = vld [vmem:[%s0 + $0x18] sm:$0xff]
    %v26 = vpack.c.bf16 %v23, %v22
    %v27 = vpack.c.bf16 %v25, %v24
    %v28 = vld [vmem:[%s1] sm:$0xff]
    %v29 = vld [vmem:[%s1 + $0x8] sm:$0xff]
    %v30 = vld [vmem:[%s1 + $0x10] sm:$0xff]
    %v31 = vld [vmem:[%s1 + $0x18] sm:$0xff]
    %v32 = vld [vmem:[%s1 + $0x20] sm:$0xff]
    %v33 = vld [vmem:[%s1 + $0x28] sm:$0xff]
    %v34 = vpack.c.bf16 %v29, %v28
    %v35 = vpack.c.bf16 %v31, %v30
    %v36 = vpack.c.bf16 %v33, %v32
    %v37 = vld [vmem:[%s2] sm:$0x1]
    %v39 = vlaneseq
    %v40 = vshrl.u32 %v39, 7
    %v41 = vsub.s32 0, %v40
    %v42 = vrot.slane %v37, %v41
    %vm44 = vcmask 392192
    %v46 = vsel %vm44, %v26, 0
    %v49 = vsel %vm44, %v27, 0
    %51 = vmatprep.subr.bf16.mxu0 0
    %52 = vmatpush1.bf16.msra.mxu0 %v34
    %53 = vmatprep.subr.bf16.mxu0 0
    %54 = vmatpush1.bf16.msra.mxu0 %v35
    %55 = vmatprep.subr.bf16.mxu0 0
    %56 = vmatpush1.bf16.msra.mxu0 %v36
    %57 = vmatprep.subr.bf16.mxu0 0
    %58 = vmatpush1.bf16.msra.mxu0 0
    %59 = vmatprep.subr.bf16.mxu0 0
    %60 = vmatpush1.bf16.msra.mxu0 0
    %61 = vmatprep.subr.bf16.mxu0 0
    %62 = vmatpush1.bf16.msra.mxu0 0
    %63 = vmatprep.subr.bf16.mxu0 0
    %64 = vmatpush1.bf16.msra.mxu0 0
    %65 = vmatprep.subr.bf16.mxu0 0
    %66 = vmatpush1.bf16.msra.mxu0 0
    %67 = vmatprep.subr.bf16.mxu0 0
    %68 = vmatpush1.bf16.msra.mxu0 0
    %69 = vmatprep.subr.bf16.mxu0 0
    %70 = vmatpush1.bf16.msra.mxu0 0
    %71 = vmatprep.subr.bf16.mxu0 0
    %72 = vmatpush1.bf16.msra.mxu0 0
    %73 = vmatprep.subr.bf16.mxu0 0
    %74 = vmatpush1.bf16.msra.mxu0 0
    %75 = vmatprep.subr.bf16.mxu0 0
    %76 = vmatpush1.bf16.msra.mxu0 0
    %77 = vmatprep.subr.bf16.mxu0 0
    %78 = vmatpush1.bf16.msra.mxu0 0
    %79 = vmatprep.subr.bf16.mxu0 0
    %80 = vmatpush1.bf16.msra.mxu0 0
    %81 = vmatprep.subr.bf16.mxu0 0
    %82 = vmatpush1.bf16.msra.mxu0 0
    %83 = vmatprep.mubr.bf16.mxu0 0
    %84 = vmatmul.mubr.bf16.gmra.mrb[0].mxu0 %v46
    %v85 = vpop.f32.mrb[0].mxu0
    %v86 = vadd.f32 %v42, %v85
    %v87 = vpop.f32.mrb[0].mxu0
    %v88 = vpop.f32.mrb[0].mxu0
    %v89 = vadd.f32 %v42, %v88
    %v90 = vpop.f32.mrb[0].mxu0
    %91 = vmatprep.mubr.bf16.mxu0 0
    %92 = vmatmul.mubr.bf16.gmra.mrb[0].mxu0 %v49
    %v93 = vpop.f32.mrb[0].mxu0
    %v94 = vadd.f32 %v42, %v93
    %v95 = vpop.f32.mrb[0].mxu0
    %v96 = vpop.f32.mrb[0].mxu0
    %v97 = vadd.f32 %v42, %v96
    %v98 = vpop.f32.mrb[0].mxu0
    %99 = vdwg.mxu0
    %v100 = vmax.f32 %v86, 0.0
    %v101 = vmax.f32 %v89, 0.0
    %v102 = vmax.f32 %v94, 0.0
    %v103 = vmax.f32 %v97, 0.0
    %v104 = vpack.c.bf16 %v101, %v100
    %v105 = vpack.c.bf16 %v103, %v102
    %v106 = vld [vmem:[%s3] sm:$0xff]
    %v107 = vld [vmem:[%s3 + $0x8] sm:$0xff]
    %v108 = vld [vmem:[%s3 + $0x10] sm:$0xff]
    %v109 = vld [vmem:[%s3 + $0x18] sm:$0xff]
    %v110 = vld [vmem:[%s3 + $0x20] sm:$0xff]
    %v111 = vld [vmem:[%s3 + $0x28] sm:$0xff]
    %v112 = vld [vmem:[%s3 + $0x30] sm:$0xff]
    %v113 = vld [vmem:[%s3 + $0x38] sm:$0xff]
    %v114 = vpack.c.bf16 %v107, %v106
    %v115 = vpack.c.bf16 %v109, %v108
    %v116 = vpack.c.bf16 %v111, %v110
    %v117 = vpack.c.bf16 %v113, %v112
    %v118 = vld [vmem:[%s4] sm:$0x1]
    %v120 = vlaneseq
    %v121 = vshrl.u32 %v120, 7
    %v122 = vsub.s32 0, %v121
    %v123 = vrot.slane %v118, %v122
    %vm125 = vcmask 523264
    %v127 = vsel %vm125, %v104, 0
    %v130 = vsel %vm125, %v105, 0
    %132 = vmatprep.subr.bf16.mxu0 0
    %133 = vmatpush1.bf16.msra.mxu0 %v114
    %134 = vmatprep.subr.bf16.mxu0 0
    %135 = vmatpush1.bf16.msra.mxu0 %v115
    %136 = vmatprep.subr.bf16.mxu0 0
    %137 = vmatpush1.bf16.msra.mxu0 %v116
    %138 = vmatprep.subr.bf16.mxu0 0
    %139 = vmatpush1.bf16.msra.mxu0 %v117
    %140 = vmatprep.subr.bf16.mxu0 0
    %141 = vmatpush1.bf16.msra.mxu0 0
    %142 = vmatprep.subr.bf16.mxu0 0
    %143 = vmatpush1.bf16.msra.mxu0 0
    %144 = vmatprep.subr.bf16.mxu0 0
    %145 = vmatpush1.bf16.msra.mxu0 0
    %146 = vmatprep.subr.bf16.mxu0 0
    %147 = vmatpush1.bf16.msra.mxu0 0
    %148 = vmatprep.subr.bf16.mxu0 0
    %149 = vmatpush1.bf16.msra.mxu0 0
    %150 = vmatprep.subr.bf16.mxu0 0
    %151 = vmatpush1.bf16.msra.mxu0 0
    %152 = vmatprep.subr.bf16.mxu0 0
    %153 = vmatpush1.bf16.msra.mxu0 0
    %154 = vmatprep.subr.bf16.mxu0 0
    %155 = vmatpush1.bf16.msra.mxu0 0
    %156 = vmatprep.subr.bf16.mxu0 0
    %157 = vmatpush1.bf16.msra.mxu0 0
    %158 = vmatprep.subr.bf16.mxu0 0
    %159 = vmatpush1.bf16.msra.mxu0 0
    %160 = vmatprep.subr.bf16.mxu0 0
    %161 = vmatpush1.bf16.msra.mxu0 0
    %162 = vmatprep.subr.bf16.mxu0 0
    %163 = vmatpush1.bf16.msra.mxu0 0
    %164 = vmatprep.mubr.bf16.mxu0 0
    %165 = vmatmul.mubr.bf16.gmra.mrb[0].mxu0 %v127
    %v166 = vpop.f32.mrb[0].mxu0
    %v167 = vadd.f32 %v123, %v166
    %v168 = vpop.f32.mrb[0].mxu0
    %v169 = vpop.f32.mrb[0].mxu0
    %v170 = vadd.f32 %v123, %v169
    %v171 = vpop.f32.mrb[0].mxu0
    %172 = vmatprep.mubr.bf16.mxu0 0
    %173 = vmatmul.mubr.bf16.gmra.mrb[0].mxu0 %v130
    %v174 = vpop.f32.mrb[0].mxu0
    %v175 = vadd.f32 %v123, %v174
    %v176 = vpop.f32.mrb[0].mxu0
    %v177 = vpop.f32.mrb[0].mxu0
    %v178 = vadd.f32 %v123, %v177
    %v179 = vpop.f32.mrb[0].mxu0
    %180 = vdwg.mxu0
    %vm181 = vcmask 261120
    %182 = vst.msk [vmem:[#allocation2] sm:$0xff] %vm181, %v167
    %183 = vst.msk [vmem:[#allocation2 + $0x8] sm:$0xff] %vm181, %v170
    %184 = vst.msk [vmem:[#allocation2 + $0x10] sm:$0xff] %vm181, %v175
    %185 = vst.msk [vmem:[#allocation2 + $0x18] sm:$0xff] %vm181, %v178
    // Predicated region
    $region22: #{tpu_custom_call.1} parent=1 // pred_check
      _
    $region23: #{tpu_custom_call.1} parent=1 // pred_check_branch
      %187 = sbr.rel (0) target = $region25
    $region24: #{tpu_custom_call.1} parent=1 // pred_region
      %s189 = ssub.s32 512, 512
      %190 = vsyncadd [#allocation3], %s189
      %s191 = sshll.u32 [#allocation2], 4
      %s192 = int_to_ptr.vmem [resolvable:$true] %s191
      %197 = dma.vmem_to_hbm [thread:$0]  %s192, 512, %s5, [#allocation3], 128, 128, 8
    $region25: #{tpu_custom_call.1} parent=1 // pred_fallthru
      _
    // Predicated region
    $region26: #{tpu_custom_call.1} parent=1 // pred_check
      _
    $region27: #{tpu_custom_call.1} parent=1 // pred_check_branch
      %199 = sbr.rel (0) target = $region29
    $region28: #{tpu_custom_call.1} parent=1 // pred_region
      %200 = dma.done [#allocation3], 512
    $region29: #{tpu_custom_call.1} parent=1 // pred_fallthru
      _
    %201 = vsyncpa [#allocation3], 1

</llo_original>
